<compile_context>
chip_gen: v7x
topology: tpu7x:2x2x1
jax: 0.10.0
libtpu: 0.0.40
codegen_flags: <defaults>
</compile_context>

<pallas_src>
import functools

import jax
import jax.numpy as jnp
from jax.experimental import pallas as pl
from jax.experimental.pallas import tpu as pltpu


# ---------------------------------------------------------------------------
# Synthetic "critic_cfg" (mirrors what the PyTorch module's __init__ consumes)
# ---------------------------------------------------------------------------
CRITIC_CFG = {
    "mlp": {"activation": "ReLU", "shape": [64, 64]},
    "out_activation": "softplus",
    "clip_range": [0.0, 100.0],
}

STATE_DIM = 32          # state_dim
HIDDEN = (64, 64)       # critic_cfg['mlp']['shape']
REWARD_DIM = 4          # reward_dim
LANES = 128             # lane width / padded feature width
H_PAD = 128             # hidden widths padded to lane-dense 128
TILE_B_DEFAULT = 2048   # rows per grid step (sweep 2k-4k; 2k is v5e-safe)

# Row offsets inside the packed bf16 parameter slab.
# All segments are 16-row aligned (bf16 packs 2 rows per sublane -> (16,128)
# tiling), so every static slice below is tile-aligned and copy-free.
W1_R0 = 0                       # [STATE_DIM, 128]  (cols 0:64 hold W1)
B1_R0 = W1_R0 + STATE_DIM       # 32   (row 32 holds b1)
W2_R0 = B1_R0 + 16              # 48   [128, 128]   (block 0:64,0:64 holds W2)
B2_R0 = W2_R0 + H_PAD           # 176
W3_R0 = B2_R0 + 16              # 192  [128, 128]   (block 0:64,0:4 holds W3)
B3_R0 = W3_R0 + H_PAD           # 320
P_ROWS = B3_R0 + 16             # 336 total rows  (~86 KiB in bf16)


def critic_kernel(x_ref, p_ref, o_ref, *, clip_lo, clip_hi):
    """Fused MLP -> softplus -> clamp for one batch tile.

    x_ref : [TILE_B, STATE_DIM]  f32
    p_ref : [P_ROWS, 128]        bf16 packed (W1,b1,W2,b2,W3,b3), zero padded
    o_ref : [TILE_B, REWARD_DIM] f32 (narrow output — only useful lanes hit HBM)
    """
    bf16 = jnp.bfloat16
    x = x_ref[...].astype(bf16)                  # [TILE_B, 32]

    # Static, 16-row-aligned views into the bf16 parameter slab (no casts,
    # no extra DMAs — the slab is VMEM-resident across all grid steps).
    w1 = p_ref[W1_R0:W1_R0 + STATE_DIM, :]       # [32, 128] bf16
    b1 = p_ref[B1_R0:B1_R0 + 1, :]               # [1, 128]  bf16
    w2 = p_ref[W2_R0:W2_R0 + H_PAD, :]           # [128, 128] bf16
    b2 = p_ref[B2_R0:B2_R0 + 1, :]
    w3 = p_ref[W3_R0:W3_R0 + H_PAD, :]           # [128, 128] bf16
    b3 = p_ref[B3_R0:B3_R0 + 1, :]

    # Layer 1: Linear + ReLU (bf16 MXU inputs, f32 accumulate)
    h = jnp.dot(x, w1, preferred_element_type=jnp.float32) + b1
    h = jnp.maximum(h, 0.0)                      # zero-padded lanes stay 0

    # Layer 2: Linear + ReLU
    h = jnp.dot(h.astype(bf16), w2, preferred_element_type=jnp.float32) + b2
    h = jnp.maximum(h, 0.0)

    # Output layer: Linear (no hidden activation on the final Linear)
    y = jnp.dot(h.astype(bf16), w3, preferred_element_type=jnp.float32) + b3

    # out_activation = softplus (stable), then clamp to clip_range (f32 VPU/EUP)
    y = jnp.maximum(y, 0.0) + jnp.log1p(jnp.exp(-jnp.abs(y)))
    y = jnp.clip(y, clip_lo, clip_hi)

    # Store only the REWARD_DIM useful columns (narrow writeback).
    o_ref[...] = y[:, :REWARD_DIM].astype(o_ref.dtype)


def pack_params(params):
    """Pack (w1,b1,w2,b2,w3,b3) into one lane-dense [P_ROWS, 128] bf16 slab."""
    w1, b1, w2, b2, w3, b3 = params
    h1, h2 = HIDDEN
    buf = jnp.zeros((P_ROWS, LANES), jnp.float32)
    buf = buf.at[W1_R0:W1_R0 + STATE_DIM, :h1].set(w1)
    buf = buf.at[B1_R0, :h1].set(b1.reshape(-1))
    buf = buf.at[W2_R0:W2_R0 + h1, :h2].set(w2)
    buf = buf.at[B2_R0, :h2].set(b2.reshape(-1))
    buf = buf.at[W3_R0:W3_R0 + h2, :REWARD_DIM].set(w3)
    buf = buf.at[B3_R0, :REWARD_DIM].set(b3.reshape(-1))
    return buf.astype(jnp.bfloat16)              # one-time cast; halves param DMA


def critic_forward(state, packed_params, clip_range, *, tile_b=TILE_B_DEFAULT):
    """state: [B, state_dim] f32 -> [B, reward_dim] f32."""
    B = state.shape[0]
    # Clamp the tile to the 8-rounded batch so tiny batches still form one
    # legal block; no jnp.pad copy — Pallas masks the ragged last tile.
    tile_b = max(8, min(int(tile_b), ((B + 7) // 8) * 8))
    n_tiles = pl.cdiv(B, tile_b)

    kernel = functools.partial(
        critic_kernel, clip_lo=float(clip_range[0]), clip_hi=float(clip_range[1])
    )

    return pl.pallas_call(
        kernel,
        out_shape=jax.ShapeDtypeStruct((B, REWARD_DIM), jnp.float32),
        grid=(n_tiles,),
        in_specs=[
            # batch tile advances with the grid (last dim == full array dim)
            pl.BlockSpec((tile_b, STATE_DIM), lambda i: (i, 0)),
            # packed bf16 weights: constant block index -> single DMA,
            # VMEM-resident across all grid steps
            pl.BlockSpec((P_ROWS, LANES), lambda i: (0, 0)),
        ],
        # narrow, REWARD_DIM-wide output (last dim == full array dim)
        out_specs=pl.BlockSpec((tile_b, REWARD_DIM), lambda i: (i, 0)),
        compiler_params=pltpu.CompilerParams(
            dimension_semantics=("parallel",),        # 2x on v7x when n_tiles >= 2
            vmem_limit_bytes=32 * 1024 * 1024,        # headroom for large tile sweeps
        ),
    )(state, packed_params)


def critic_ref(state, params, clip_range):
    """Pure-JAX f32 reference (mirrors the PyTorch forward)."""
    w1, b1, w2, b2, w3, b3 = params
    h = jnp.maximum(state @ w1 + b1, 0.0)
    h = jnp.maximum(h @ w2 + b2, 0.0)
    y = h @ w3 + b3
    y = jax.nn.softplus(y)
    return jnp.clip(y, clip_range[0], clip_range[1])


def init_params(key):
    """Deterministic Linear-layer params for MLP(shape=[64, 64])."""
    h1, h2 = HIDDEN
    dims = [(STATE_DIM, h1), (h1, h2), (h2, REWARD_DIM)]
    params = []
    for i, (din, dout) in enumerate(dims):
        kw, kb = jax.random.split(jax.random.fold_in(key, i))
        scale = 1.0 / jnp.sqrt(jnp.float32(din))
        w = jax.random.uniform(kw, (din, dout), jnp.float32, -scale, scale)
        b = jax.random.uniform(kb, (1, dout), jnp.float32, -scale, scale)
        params += [w, b]
    return tuple(params)


if __name__ == "__main__":
    key = jax.random.PRNGKey(0)
    k_state, k_params = jax.random.split(key)

    BATCH = 200  # deliberately not a multiple of 128 (exercises ragged tiles)
    state = jax.random.normal(k_state, (BATCH, STATE_DIM), dtype=jnp.float32)
    params = init_params(k_params)
    packed = pack_params(params)  # done once; stays hot across rollout steps

    # Default path: tile clamps to the whole (8-aligned) batch -> single block.
    out = jax.block_until_ready(
        critic_forward(state, packed, CRITIC_CFG["clip_range"]))
    # Multi-tile path with a ragged last tile (boundary read pad / write mask).
    out_tiled = jax.block_until_ready(
        critic_forward(state, packed, CRITIC_CFG["clip_range"], tile_b=128))

    assert out.shape == (BATCH, REWARD_DIM), out.shape
    assert out_tiled.shape == (BATCH, REWARD_DIM), out_tiled.shape
    lo, hi = CRITIC_CFG["clip_range"]
    assert bool(jnp.all(out >= lo)) and bool(jnp.all(out <= hi))

    ref = critic_ref(state, params, CRITIC_CFG["clip_range"])
    err1 = float(jnp.max(jnp.abs(out - ref)))
    err2 = float(jnp.max(jnp.abs(out_tiled - ref)))
    assert err1 < 5e-2, f"max abs error (single tile) vs f32 reference: {err1}"
    assert err2 < 5e-2, f"max abs error (multi tile) vs f32 reference: {err2}"

    print("KERNEL_OK")
</pallas_src>

<mosaic_0001>
module attributes {stable_mosaic.version = 11 : i64} {
  func.func @critic_kernel(%arg0: i32, %arg1: memref<200x32xf32, #tpu.memory_space<vmem>>, %arg2: memref<336x128xbf16, #tpu.memory_space<vmem>>, %arg3: memref<200x4xf32, #tpu.memory_space<vmem>>) attributes {dimension_semantics = [#tpu.dimension_semantics<parallel>], iteration_bounds = array<i64: 1>, scalar_prefetch = 0 : i64, scratch_operands = 0 : i64, tpu.core_type = #tpu.core_type<tc>, window_params = [{transform_indices = @transform_0, window_bounds = array<i64: 200, 32>}, {pipeline_mode = #tpu.pipeline_mode<synchronous>, transform_indices = @transform_1, window_bounds = array<i64: 336, 128>}, {transform_indices = @transform_2, window_bounds = array<i64: 200, 4>}]} {
    %c0 = arith.constant 0 : index
    %c0_0 = arith.constant 0 : index
    %0 = vector.load %arg1[%c0, %c0_0] : memref<200x32xf32, #tpu.memory_space<vmem>>, vector<200x32xf32>
    %1 = arith.truncf %0 : vector<200x32xf32> to vector<200x32xbf16>
    %c0_1 = arith.constant 0 : index
    %c0_2 = arith.constant 0 : index
    %2 = vector.load %arg2[%c0_1, %c0_2] : memref<336x128xbf16, #tpu.memory_space<vmem>>, vector<32x128xbf16>
    %c32 = arith.constant 32 : index
    %c0_3 = arith.constant 0 : index
    %3 = vector.load %arg2[%c32, %c0_3] : memref<336x128xbf16, #tpu.memory_space<vmem>>, vector<1x128xbf16>
    %c48 = arith.constant 48 : index
    %c0_4 = arith.constant 0 : index
    %4 = vector.load %arg2[%c48, %c0_4] : memref<336x128xbf16, #tpu.memory_space<vmem>>, vector<128x128xbf16>
    %c176 = arith.constant 176 : index
    %c0_5 = arith.constant 0 : index
    %5 = vector.load %arg2[%c176, %c0_5] : memref<336x128xbf16, #tpu.memory_space<vmem>>, vector<1x128xbf16>
    %c192 = arith.constant 192 : index
    %c0_6 = arith.constant 0 : index
    %6 = vector.load %arg2[%c192, %c0_6] : memref<336x128xbf16, #tpu.memory_space<vmem>>, vector<128x128xbf16>
    %c320 = arith.constant 320 : index
    %c0_7 = arith.constant 0 : index
    %7 = vector.load %arg2[%c320, %c0_7] : memref<336x128xbf16, #tpu.memory_space<vmem>>, vector<1x128xbf16>
    %cst = arith.constant dense<0.000000e+00> : vector<200x128xf32>
    %8 = tpu.matmul %1, %2, %cst {dimension_numbers = #tpu.dot_dimension_numbers<[1], [0], [0], [1], [0, 0, 1, 1], [], []>} : vector<200x32xbf16>, vector<32x128xbf16>, vector<200x128xf32> -> vector<200x128xf32>
    %9 = arith.extf %3 : vector<1x128xbf16> to vector<1x128xf32>
    %10 = vector.broadcast %9 : vector<1x128xf32> to vector<200x128xf32>
    %11 = arith.addf %8, %10 : vector<200x128xf32>
    %cst_8 = arith.constant 0.000000e+00 : f32
    %12 = vector.broadcast %cst_8 : f32 to vector<200x128xf32>
    %13 = arith.maximumf %11, %12 : vector<200x128xf32>
    %14 = arith.truncf %13 : vector<200x128xf32> to vector<200x128xbf16>
    %cst_9 = arith.constant dense<0.000000e+00> : vector<200x128xf32>
    %15 = tpu.matmul %14, %4, %cst_9 {dimension_numbers = #tpu.dot_dimension_numbers<[1], [0], [0], [1], [0, 0, 1, 1], [], []>} : vector<200x128xbf16>, vector<128x128xbf16>, vector<200x128xf32> -> vector<200x128xf32>
    %16 = arith.extf %5 : vector<1x128xbf16> to vector<1x128xf32>
    %17 = vector.broadcast %16 : vector<1x128xf32> to vector<200x128xf32>
    %18 = arith.addf %15, %17 : vector<200x128xf32>
    %cst_10 = arith.constant 0.000000e+00 : f32
    %19 = vector.broadcast %cst_10 : f32 to vector<200x128xf32>
    %20 = arith.maximumf %18, %19 : vector<200x128xf32>
    %21 = arith.truncf %20 : vector<200x128xf32> to vector<200x128xbf16>
    %cst_11 = arith.constant dense<0.000000e+00> : vector<200x128xf32>
    %22 = tpu.matmul %21, %6, %cst_11 {dimension_numbers = #tpu.dot_dimension_numbers<[1], [0], [0], [1], [0, 0, 1, 1], [], []>} : vector<200x128xbf16>, vector<128x128xbf16>, vector<200x128xf32> -> vector<200x128xf32>
    %23 = arith.extf %7 : vector<1x128xbf16> to vector<1x128xf32>
    %24 = vector.broadcast %23 : vector<1x128xf32> to vector<200x128xf32>
    %25 = arith.addf %22, %24 : vector<200x128xf32>
    %cst_12 = arith.constant 0.000000e+00 : f32
    %26 = vector.broadcast %cst_12 : f32 to vector<200x128xf32>
    %27 = arith.maximumf %25, %26 : vector<200x128xf32>
    %28 = math.absf %25 : vector<200x128xf32>
    %cst_13 = arith.constant 0.000000e+00 : f32
    %29 = vector.broadcast %cst_13 : f32 to vector<200x128xf32>
    %30 = arith.subf %29, %28 : vector<200x128xf32>
    %31 = math.exp %30 : vector<200x128xf32>
    %32 = math.log1p %31 : vector<200x128xf32>
    %33 = arith.addf %27, %32 : vector<200x128xf32>
    %cst_14 = arith.constant 0.000000e+00 : f32
    %cst_15 = arith.constant 1.000000e+02 : f32
    %34 = vector.broadcast %cst_14 : f32 to vector<200x128xf32>
    %35 = arith.maximumf %34, %33 : vector<200x128xf32>
    %36 = vector.broadcast %cst_15 : f32 to vector<200x128xf32>
    %37 = arith.minimumf %36, %35 : vector<200x128xf32>
    %38 = vector.extract_strided_slice %37 {offsets = [0, 0], sizes = [200, 4], strides = [1, 1]} : vector<200x128xf32> to vector<200x4xf32>
    %c0_16 = arith.constant 0 : index
    %c0_17 = arith.constant 0 : index
    %39 = vector.load %arg3[%c0_16, %c0_17] : memref<200x4xf32, #tpu.memory_space<vmem>>, vector<200x4xf32>
    tpu.vector_store %arg3[%c0_16, %c0_17], %38 {strides = array<i32>} : memref<200x4xf32, #tpu.memory_space<vmem>>, vector<200x4xf32>,
    return
  }
  func.func @transform_0(%arg0: i32) -> (i32, i32) {
    %c0_i32 = arith.constant 0 : i32
    %c0_i32_0 = arith.constant 0 : i32
    return %arg0, %c0_i32 : i32, i32
  }
  func.func @transform_1(%arg0: i32) -> (i32, i32) {
    %c0_i32 = arith.constant 0 : i32
    %c0_i32_0 = arith.constant 0 : i32
    %c0_i32_1 = arith.constant 0 : i32
    return %c0_i32, %c0_i32_0 : i32, i32
  }
  func.func @transform_2(%arg0: i32) -> (i32, i32) {
    %c0_i32 = arith.constant 0 : i32
    %c0_i32_0 = arith.constant 0 : i32
    return %arg0, %c0_i32 : i32, i32
  }
}

</mosaic_0001>

<llo_original>
// kernel: tpu_custom_call.1
$region0: #{tpu_custom_call.1}
  #allocation0 [shape = 'u32[]', space=smem, size = 0x4, offset = 0x4, fixed_abs, tag = 'smem constant byte address 0x4 - core index']
  #allocation1 [shape = 'u32[144,128]{1,0:T(1,128)}', space=vmem, size = 0x12000, scoped, tag = 'internal scratch']
  %s0 = inlined_call_operand.vmem [shape: f32[200,32], index: 0, kind: input, shape index: {}]
  %s1 = inlined_call_operand.vmem [shape: bf16[336,128], index: 1, kind: input, shape index: {}]
  %s2 = inlined_call_operand.vmem [shape: f32[200,4], index: 2, kind: output, shape index: {}]
  %s3 = sld [smem:[#allocation0]]
  $region18: #{tpu_custom_call.1} parent=0
    _
  %s5 = ssub.s32 1, %s3
  %s6 = scalar_select 0, %s5, %s3
  // Predicated region
  $region2: #{tpu_custom_call.1} parent=0 // pred_check
    _
  $region3: #{tpu_custom_call.1} parent=0 // pred_check_branch
    %8 = sbr.rel (0) target = $region5
  $region4: #{tpu_custom_call.1} parent=0 // pred_region
    _
  $region5: #{tpu_custom_call.1} parent=0 // pred_fallthru
    _
  // Predicated region
  $region6: #{tpu_custom_call.1} parent=0 // pred_check
    _
  $region7: #{tpu_custom_call.1} parent=0 // pred_check_branch
    %10 = sbr.rel (0) target = $region9
  $region8: #{tpu_custom_call.1} parent=0 // pred_region
    _
  $region9: #{tpu_custom_call.1} parent=0 // pred_fallthru
    _
  %v12 = vld [vmem:[%s0] sm:$0xff]
  %v13 = vld [vmem:[%s0 + $0x8] sm:$0xff]
  %v14 = vld [vmem:[%s0 + $0x10] sm:$0xff]
  %v15 = vld [vmem:[%s0 + $0x18] sm:$0xff]
  %v16 = vld [vmem:[%s0 + $0x20] sm:$0xff]
  %v17 = vld [vmem:[%s0 + $0x28] sm:$0xff]
  %v18 = vld [vmem:[%s0 + $0x30] sm:$0xff]
  %v19 = vld [vmem:[%s0 + $0x38] sm:$0xff]
  %v20 = vld [vmem:[%s0 + $0x40] sm:$0xff]
  %v21 = vld [vmem:[%s0 + $0x48] sm:$0xff]
  %v22 = vld [vmem:[%s0 + $0x50] sm:$0xff]
  %v23 = vld [vmem:[%s0 + $0x58] sm:$0xff]
  %v24 = vld [vmem:[%s0 + $0x60] sm:$0xff]
  %v25 = vld [vmem:[%s0 + $0x68] sm:$0xff]
  %v26 = vld [vmem:[%s0 + $0x70] sm:$0xff]
  %v27 = vld [vmem:[%s0 + $0x78] sm:$0xff]
  %v28 = vld [vmem:[%s0 + $0x80] sm:$0xff]
  %v29 = vld [vmem:[%s0 + $0x88] sm:$0xff]
  %v30 = vld [vmem:[%s0 + $0x90] sm:$0xff]
  %v31 = vld [vmem:[%s0 + $0x98] sm:$0xff]
  %v32 = vld [vmem:[%s0 + $0xa0] sm:$0xff]
  %v33 = vld [vmem:[%s0 + $0xa8] sm:$0xff]
  %v34 = vld [vmem:[%s0 + $0xb0] sm:$0xff]
  %v35 = vld [vmem:[%s0 + $0xb8] sm:$0xff]
  %v36 = vld [vmem:[%s0 + $0xc0] sm:$0xff]
  %v37 = vpack.c.bf16 %v13, %v12
  %v38 = vpack.c.bf16 %v15, %v14
  %v39 = vpack.c.bf16 %v17, %v16
  %v40 = vpack.c.bf16 %v19, %v18
  %v41 = vpack.c.bf16 %v21, %v20
  %v42 = vpack.c.bf16 %v23, %v22
  %v43 = vpack.c.bf16 %v25, %v24
  %v44 = vpack.c.bf16 %v27, %v26
  %v45 = vpack.c.bf16 %v29, %v28
  %v46 = vpack.c.bf16 %v31, %v30
  %v47 = vpack.c.bf16 %v33, %v32
  %v48 = vpack.c.bf16 %v35, %v34
  %v49 = vpack.c.bf16 %v36, %v36
  %v50 = vld [vmem:[%s1] sm:$0xf]
  %v51 = vld [vmem:[%s1 + $0x4] sm:$0xf]
  %v52 = vld [vmem:[%s1 + $0x8] sm:$0xf]
  %v53 = vld [vmem:[%s1 + $0xc] sm:$0xf]
  %v54 = vld [vmem:[%s1 + $0x10] sm:$0x1]
  %v55 = vld [vmem:[%s1 + $0x18] sm:$0xf]
  %v56 = vld [vmem:[%s1 + $0x1c] sm:$0xf]
  %v57 = vld [vmem:[%s1 + $0x20] sm:$0xf]
  %v58 = vld [vmem:[%s1 + $0x24] sm:$0xf]
  %v59 = vld [vmem:[%s1 + $0x28] sm:$0xf]
  %v60 = vld [vmem:[%s1 + $0x2c] sm:$0xf]
  %v61 = vld [vmem:[%s1 + $0x30] sm:$0xf]
  %v62 = vld [vmem:[%s1 + $0x34] sm:$0xf]
  %v63 = vld [vmem:[%s1 + $0x38] sm:$0xf]
  %v64 = vld [vmem:[%s1 + $0x3c] sm:$0xf]
  %v65 = vld [vmem:[%s1 + $0x40] sm:$0xf]
  %v66 = vld [vmem:[%s1 + $0x44] sm:$0xf]
  %v67 = vld [vmem:[%s1 + $0x48] sm:$0xf]
  %v68 = vld [vmem:[%s1 + $0x4c] sm:$0xf]
  %v69 = vld [vmem:[%s1 + $0x50] sm:$0xf]
  %v70 = vld [vmem:[%s1 + $0x54] sm:$0xf]
  %v71 = vld [vmem:[%s1 + $0x58] sm:$0x1]
  %v72 = vld [vmem:[%s1 + $0x60] sm:$0xf]
  %v73 = vld [vmem:[%s1 + $0x64] sm:$0xf]
  %v74 = vld [vmem:[%s1 + $0x68] sm:$0xf]
  %v75 = vld [vmem:[%s1 + $0x6c] sm:$0xf]
  %v76 = vld [vmem:[%s1 + $0x70] sm:$0xf]
  %v77 = vld [vmem:[%s1 + $0x74] sm:$0xf]
  %v78 = vld [vmem:[%s1 + $0x78] sm:$0xf]
  %v79 = vld [vmem:[%s1 + $0x7c] sm:$0xf]
  %v80 = vld [vmem:[%s1 + $0x80] sm:$0xf]
  %v81 = vld [vmem:[%s1 + $0x84] sm:$0xf]
  %v82 = vld [vmem:[%s1 + $0x88] sm:$0xf]
  %v83 = vld [vmem:[%s1 + $0x8c] sm:$0xf]
  %v84 = vld [vmem:[%s1 + $0x90] sm:$0xf]
  %v85 = vld [vmem:[%s1 + $0x94] sm:$0xf]
  %v86 = vld [vmem:[%s1 + $0x98] sm:$0xf]
  %v87 = vld [vmem:[%s1 + $0x9c] sm:$0xf]
  %v88 = vld [vmem:[%s1 + $0xa0] sm:$0x1]
  %v89 = vunpack.c.l.bf16 %v54
  %v90 = vlaneseq
  %v91 = vshrl.u32 %v90, 7
  %v92 = vsub.s32 0, %v91
  %v93 = vrot.slane %v89, %v92
  %v98 = vunpack.c.l.b16 %v50
  %v99 = vunpack.c.l.b16 %v51
  %v100 = vunpack.c.l.b16 %v52
  %v101 = vunpack.c.l.b16 %v53
  %v102 = vpack.c.b16 %v99, %v98
  %v103 = vpack.c.b16 %v101, %v100
  %vm106 = vcmask 261120
  %v108 = vsel %vm106, %v37, 0
  %v111 = vsel %vm106, %v38, 0
  %v114 = vsel %vm106, %v39, 0
  %v117 = vsel %vm106, %v40, 0
  %v120 = vsel %vm106, %v41, 0
  %v123 = vsel %vm106, %v42, 0
  %v126 = vsel %vm106, %v43, 0
  %v129 = vsel %vm106, %v44, 0
  %v132 = vsel %vm106, %v45, 0
  %v135 = vsel %vm106, %v46, 0
  %v138 = vsel %vm106, %v47, 0
  %v141 = vsel %vm106, %v48, 0
  %v144 = vsel %vm106, %v49, 0
  %146 = vmatprep.subr.bf16.mxu0 0
  %147 = vmatpush1.bf16.msra.mxu0 %v102
  %148 = vmatprep.subr.bf16.mxu0 0
  %149 = vmatpush1.bf16.msra.mxu0 %v103
  %150 = vmatprep.subr.bf16.mxu0 0
  %151 = vmatpush1.bf16.msra.mxu0 0
  %152 = vmatprep.subr.bf16.mxu0 0
  %153 = vmatpush1.bf16.msra.mxu0 0
  %154 = vmatprep.subr.bf16.mxu0 0
  %155 = vmatpush1.bf16.msra.mxu0 0
  %156 = vmatprep.subr.bf16.mxu0 0
  %157 = vmatpush1.bf16.msra.mxu0 0
  %158 = vmatprep.subr.bf16.mxu0 0
  %159 = vmatpush1.bf16.msra.mxu0 0
  %160 = vmatprep.subr.bf16.mxu0 0
  %161 = vmatpush1.bf16.msra.mxu0 0
  %162 = vmatprep.subr.bf16.mxu0 0
  %163 = vmatpush1.bf16.msra.mxu0 0
  %164 = vmatprep.subr.bf16.mxu0 0
  %165 = vmatpush1.bf16.msra.mxu0 0
  %166 = vmatprep.subr.bf16.mxu0 0
  %167 = vmatpush1.bf16.msra.mxu0 0
  %168 = vmatprep.subr.bf16.mxu0 0
  %169 = vmatpush1.bf16.msra.mxu0 0
  %170 = vmatprep.subr.bf16.mxu0 0
  %171 = vmatpush1.bf16.msra.mxu0 0
  %172 = vmatprep.subr.bf16.mxu0 0
  %173 = vmatpush1.bf16.msra.mxu0 0
  %174 = vmatprep.subr.bf16.mxu0 0
  %175 = vmatpush1.bf16.msra.mxu0 0
  %176 = vmatprep.subr.bf16.mxu0 0
  %177 = vmatpush1.bf16.msra.mxu0 0
  %178 = vmatprep.mubr.bf16.mxu0 0
  %179 = vmatmul.mubr.bf16.gmra.mrb[0].mxu0 %v108
  %v180 = vpop.f32.mrb[0].mxu0
  %v181 = vadd.f32 %v93, %v180
  %v182 = vpop.f32.mrb[0].mxu0
  %v183 = vpop.f32.mrb[0].mxu0
  %v184 = vadd.f32 %v93, %v183
  %v185 = vpop.f32.mrb[0].mxu0
  %186 = vmatprep.mubr.bf16.mxu0 0
  %187 = vmatmul.mubr.bf16.gmra.mrb[0].mxu0 %v111
  %v188 = vpop.f32.mrb[0].mxu0
  %v189 = vadd.f32 %v93, %v188
  %v190 = vpop.f32.mrb[0].mxu0
  %v191 = vpop.f32.mrb[0].mxu0
  %v192 = vadd.f32 %v93, %v191
  %v193 = vpop.f32.mrb[0].mxu0
  %194 = vmatprep.mubr.bf16.mxu0 0
  %195 = vmatmul.mubr.bf16.gmra.mrb[0].mxu0 %v114
  %v196 = vpop.f32.mrb[0].mxu0
  %v197 = vadd.f32 %v93, %v196
  %v198 = vpop.f32.mrb[0].mxu0
  %v199 = vpop.f32.mrb[0].mxu0
  %v200 = vadd.f32 %v93, %v199
  %v201 = vpop.f32.mrb[0].mxu0
  %202 = vmatprep.mubr.bf16.mxu0 0
  %203 = vmatmul.mubr.bf16.gmra.mrb[0].mxu0 %v117
  %v204 = vpop.f32.mrb[0].mxu0
  %v205 = vadd.f32 %v93, %v204
  %v206 = vpop.f32.mrb[0].mxu0
  %v207 = vpop.f32.mrb[0].mxu0
  %v208 = vadd.f32 %v93, %v207
  %v209 = vpop.f32.mrb[0].mxu0
  %210 = vmatprep.mubr.bf16.mxu0 0
  %211 = vmatmul.mubr.bf16.gmra.mrb[0].mxu0 %v120
  %v212 = vpop.f32.mrb[0].mxu0
  %v213 = vadd.f32 %v93, %v212
  %v214 = vpop.f32.mrb[0].mxu0
  %v215 = vpop.f32.mrb[0].mxu0
  %v216 = vadd.f32 %v93, %v215
  %v217 = vpop.f32.mrb[0].mxu0
  %218 = vmatprep.mubr.bf16.mxu0 0
  %219 = vmatmul.mubr.bf16.gmra.mrb[0].mxu0 %v123
  %v220 = vpop.f32.mrb[0].mxu0
  %v221 = vadd.f32 %v93, %v220
  %v222 = vpop.f32.mrb[0].mxu0
  %v223 = vpop.f32.mrb[0].mxu0
  %v224 = vadd.f32 %v93, %v223
  %v225 = vpop.f32.mrb[0].mxu0
  %226 = vmatprep.mubr.bf16.mxu0 0
  %227 = vmatmul.mubr.bf16.gmra.mrb[0].mxu0 %v126
  %v228 = vpop.f32.mrb[0].mxu0
  %v229 = vadd.f32 %v93, %v228
  %v230 = vpop.f32.mrb[0].mxu0
  %v231 = vpop.f32.mrb[0].mxu0
  %v232 = vadd.f32 %v93, %v231
  %v233 = vpop.f32.mrb[0].mxu0
  %234 = vmatprep.mubr.bf16.mxu0 0
  %235 = vmatmul.mubr.bf16.gmra.mrb[0].mxu0 %v129
  %v236 = vpop.f32.mrb[0].mxu0
  %v237 = vadd.f32 %v93, %v236
  %v238 = vpop.f32.mrb[0].mxu0
  %v239 = vpop.f32.mrb[0].mxu0
  %v240 = vadd.f32 %v93, %v239
  %v241 = vpop.f32.mrb[0].mxu0
  %242 = vmatprep.mubr.bf16.mxu0 0
  %243 = vmatmul.mubr.bf16.gmra.mrb[0].mxu0 %v132
  %v244 = vpop.f32.mrb[0].mxu0
  %v245 = vadd.f32 %v93, %v244
  %v246 = vpop.f32.mrb[0].mxu0
  %v247 = vpop.f32.mrb[0].mxu0
  %v248 = vadd.f32 %v93, %v247
  %v249 = vpop.f32.mrb[0].mxu0
  %250 = vmatprep.mubr.bf16.mxu0 0
  %251 = vmatmul.mubr.bf16.gmra.mrb[0].mxu0 %v135
  %v252 = vpop.f32.mrb[0].mxu0
  %v253 = vadd.f32 %v93, %v252
  %v254 = vpop.f32.mrb[0].mxu0
  %v255 = vpop.f32.mrb[0].mxu0
  %v256 = vadd.f32 %v93, %v255
  %v257 = vpop.f32.mrb[0].mxu0
  %258 = vmatprep.mubr.bf16.mxu0 0
  %259 = vmatmul.mubr.bf16.gmra.mrb[0].mxu0 %v138
  %v260 = vpop.f32.mrb[0].mxu0
  %v261 = vadd.f32 %v93, %v260
  %v262 = vpop.f32.mrb[0].mxu0
  %v263 = vpop.f32.mrb[0].mxu0
  %v264 = vadd.f32 %v93, %v263
  %v265 = vpop.f32.mrb[0].mxu0
  %266 = vmatprep.mubr.bf16.mxu0 0
  %267 = vmatmul.mubr.bf16.gmra.mrb[0].mxu0 %v141
  %v268 = vpop.f32.mrb[0].mxu0
  %v269 = vadd.f32 %v93, %v268
  %v270 = vpop.f32.mrb[0].mxu0
  %v271 = vpop.f32.mrb[0].mxu0
  %v272 = vadd.f32 %v93, %v271
  %v273 = vpop.f32.mrb[0].mxu0
  %274 = vmatprep.mubr.bf16.mxu0 0
  %275 = vmatmul.mubr.bf16.gmra.mrb[0].mxu0 %v144
  %v276 = vpop.f32.mrb[0].mxu0
  %v277 = vadd.f32 %v93, %v276
  %v278 = vpop.f32.mrb[0].mxu0
  %v279 = vpop.f32.mrb[0].mxu0
  %v280 = vpop.f32.mrb[0].mxu0
  %281 = vdwg.mxu0
  %v282 = vmax.f32 %v181, 0.0
  %v283 = vmax.f32 %v184, 0.0
  %v284 = vmax.f32 %v189, 0.0
  %v285 = vmax.f32 %v192, 0.0
  %v286 = vmax.f32 %v197, 0.0
  %v287 = vmax.f32 %v200, 0.0
  %v288 = vmax.f32 %v205, 0.0
  %v289 = vmax.f32 %v208, 0.0
  %v290 = vmax.f32 %v213, 0.0
  %v291 = vmax.f32 %v216, 0.0
  %v292 = vmax.f32 %v221, 0.0
  %v293 = vmax.f32 %v224, 0.0
  %v294 = vmax.f32 %v229, 0.0
  %v295 = vmax.f32 %v232, 0.0
  %v296 = vmax.f32 %v237, 0.0
  %v297 = vmax.f32 %v240, 0.0
  %v298 = vmax.f32 %v245, 0.0
  %v299 = vmax.f32 %v248, 0.0
  %v300 = vmax.f32 %v253, 0.0
  %v301 = vmax.f32 %v256, 0.0
  %v302 = vmax.f32 %v261, 0.0
  %v303 = vmax.f32 %v264, 0.0
  %v304 = vmax.f32 %v269, 0.0
  %v305 = vmax.f32 %v272, 0.0
  %v306 = vmax.f32 %v277, 0.0
  %v307 = vpack.c.bf16 %v283, %v282
  %v308 = vpack.c.bf16 %v285, %v284
  %v309 = vpack.c.bf16 %v287, %v286
  %v310 = vpack.c.bf16 %v289, %v288
  %v311 = vpack.c.bf16 %v291, %v290
  %v312 = vpack.c.bf16 %v293, %v292
  %v313 = vpack.c.bf16 %v295, %v294
  %v314 = vpack.c.bf16 %v297, %v296
  %v315 = vpack.c.bf16 %v299, %v298
  %v316 = vpack.c.bf16 %v301, %v300
  %v317 = vpack.c.bf16 %v303, %v302
  %v318 = vpack.c.bf16 %v305, %v304
  %v319 = vpack.c.bf16 %v306, %v306
  %v320 = vunpack.c.l.bf16 %v71
  %v321 = vlaneseq
  %v322 = vshrl.u32 %v321, 7
  %v323 = vsub.s32 0, %v322
  %v324 = vrot.slane %v320, %v323
  %v341 = vunpack.c.l.b16 %v55
  %v342 = vunpack.c.l.b16 %v56
  %v343 = vunpack.c.l.b16 %v57
  %v344 = vunpack.c.l.b16 %v58
  %v345 = vunpack.c.l.b16 %v59
  %v346 = vunpack.c.l.b16 %v60
  %v347 = vunpack.c.l.b16 %v61
  %v348 = vunpack.c.l.b16 %v62
  %v349 = vunpack.c.l.b16 %v63
  %v350 = vunpack.c.l.b16 %v64
  %v351 = vunpack.c.l.b16 %v65
  %v352 = vunpack.c.l.b16 %v66
  %v353 = vunpack.c.l.b16 %v67
  %v354 = vunpack.c.l.b16 %v68
  %v355 = vunpack.c.l.b16 %v69
  %v356 = vunpack.c.l.b16 %v70
  %v357 = vpack.c.b16 %v342, %v341
  %v358 = vpack.c.b16 %v344, %v343
  %v359 = vpack.c.b16 %v346, %v345
  %v360 = vpack.c.b16 %v348, %v347
  %v361 = vpack.c.b16 %v350, %v349
  %v362 = vpack.c.b16 %v352, %v351
  %v363 = vpack.c.b16 %v354, %v353
  %v364 = vpack.c.b16 %v356, %v355
  %373 = vmatprep.subr.bf16.mxu0 0
  %374 = vmatpush1.bf16.msra.mxu0 %v357
  %375 = vmatprep.subr.bf16.mxu0 0
  %376 = vmatpush1.bf16.msra.mxu0 %v358
  %377 = vmatprep.subr.bf16.mxu0 0
  %378 = vmatpush1.bf16.msra.mxu0 %v359
  %379 = vmatprep.subr.bf16.mxu0 0
  %380 = vmatpush1.bf16.msra.mxu0 %v360
  %381 = vmatprep.subr.bf16.mxu0 0
  %382 = vmatpush1.bf16.msra.mxu0 %v361
  %383 = vmatprep.subr.bf16.mxu0 0
  %384 = vmatpush1.bf16.msra.mxu0 %v362
  %385 = vmatprep.subr.bf16.mxu0 0
  %386 = vmatpush1.bf16.msra.mxu0 %v363
  %387 = vmatprep.subr.bf16.mxu0 0
  %388 = vmatpush1.bf16.msra.mxu0 %v364
  %389 = vmatprep.subr.bf16.mxu0 0
  %390 = vmatpush1.bf16.msra.mxu0 0
  %391 = vmatprep.subr.bf16.mxu0 0
  %392 = vmatpush1.bf16.msra.mxu0 0
  %393 = vmatprep.subr.bf16.mxu0 0
  %394 = vmatpush1.bf16.msra.mxu0 0
  %395 = vmatprep.subr.bf16.mxu0 0
  %396 = vmatpush1.bf16.msra.mxu0 0
  %397 = vmatprep.subr.bf16.mxu0 0
  %398 = vmatpush1.bf16.msra.mxu0 0
  %399 = vmatprep.subr.bf16.mxu0 0
  %400 = vmatpush1.bf16.msra.mxu0 0
  %401 = vmatprep.subr.bf16.mxu0 0
  %402 = vmatpush1.bf16.msra.mxu0 0
  %403 = vmatprep.subr.bf16.mxu0 0
  %404 = vmatpush1.bf16.msra.mxu0 0
  %405 = vmatprep.mubr.bf16.mxu0 0
  %406 = vmatmul.mubr.bf16.gmra.mrb[0].mxu0 %v307
  %v407 = vpop.f32.mrb[0].mxu0
  %v408 = vadd.f32 %v324, %v407
  %v409 = vpop.f32.mrb[0].mxu0
  %v410 = vpop.f32.mrb[0].mxu0
  %v411 = vadd.f32 %v324, %v410
  %v412 = vpop.f32.mrb[0].mxu0
  %413 = vmatprep.mubr.bf16.mxu0 0
  %414 = vmatmul.mubr.bf16.gmra.mrb[0].mxu0 %v308
  %v415 = vpop.f32.mrb[0].mxu0
  %v416 = vadd.f32 %v324, %v415
  %v417 = vpop.f32.mrb[0].mxu0
  %v418 = vpop.f32.mrb[0].mxu0
  %v419 = vadd.f32 %v324, %v418
  %v420 = vpop.f32.mrb[0].mxu0
  %421 = vmatprep.mubr.bf16.mxu0 0
  %422 = vmatmul.mubr.bf16.gmra.mrb[0].mxu0 %v309
  %v423 = vpop.f32.mrb[0].mxu0
  %v424 = vadd.f32 %v324, %v423
  %v425 = vpop.f32.mrb[0].mxu0
  %v426 = vpop.f32.mrb[0].mxu0
  %v427 = vadd.f32 %v324, %v426
  %v428 = vpop.f32.mrb[0].mxu0
  %429 = vmatprep.mubr.bf16.mxu0 0
  %430 = vmatmul.mubr.bf16.gmra.mrb[0].mxu0 %v310
  %v431 = vpop.f32.mrb[0].mxu0
  %v432 = vadd.f32 %v324, %v431
  %v433 = vpop.f32.mrb[0].mxu0
  %v434 = vpop.f32.mrb[0].mxu0
  %v435 = vadd.f32 %v324, %v434
  %v436 = vpop.f32.mrb[0].mxu0
  %437 = vmatprep.mubr.bf16.mxu0 0
  %438 = vmatmul.mubr.bf16.gmra.mrb[0].mxu0 %v311
  %v439 = vpop.f32.mrb[0].mxu0
  %v440 = vadd.f32 %v324, %v439
  %v441 = vpop.f32.mrb[0].mxu0
  %v442 = vpop.f32.mrb[0].mxu0
  %v443 = vadd.f32 %v324, %v442
  %v444 = vpop.f32.mrb[0].mxu0
  %445 = vmatprep.mubr.bf16.mxu0 0
  %446 = vmatmul.mubr.bf16.gmra.mrb[0].mxu0 %v312
  %v447 = vpop.f32.mrb[0].mxu0
  %v448 = vadd.f32 %v324, %v447
  %v449 = vpop.f32.mrb[0].mxu0
  %v450 = vpop.f32.mrb[0].mxu0
  %v451 = vadd.f32 %v324, %v450
  %v452 = vpop.f32.mrb[0].mxu0
  %453 = vmatprep.mubr.bf16.mxu0 0
  %454 = vmatmul.mubr.bf16.gmra.mrb[0].mxu0 %v313
  %v455 = vpop.f32.mrb[0].mxu0
  %v456 = vadd.f32 %v324, %v455
  %v457 = vpop.f32.mrb[0].mxu0
  %v458 = vpop.f32.mrb[0].mxu0
  %v459 = vadd.f32 %v324, %v458
  %v460 = vpop.f32.mrb[0].mxu0
  %461 = vmatprep.mubr.bf16.mxu0 0
  %462 = vmatmul.mubr.bf16.gmra.mrb[0].mxu0 %v314
  %v463 = vpop.f32.mrb[0].mxu0
  %v464 = vadd.f32 %v324, %v463
  %v465 = vpop.f32.mrb[0].mxu0
  %v466 = vpop.f32.mrb[0].mxu0
  %v467 = vadd.f32 %v324, %v466
  %v468 = vpop.f32.mrb[0].mxu0
  %469 = vmatprep.mubr.bf16.mxu0 0
  %470 = vmatmul.mubr.bf16.gmra.mrb[0].mxu0 %v315
  %v471 = vpop.f32.mrb[0].mxu0
  %v472 = vadd.f32 %v324, %v471
  %v473 = vpop.f32.mrb[0].mxu0
  %v474 = vpop.f32.mrb[0].mxu0
  %v475 = vadd.f32 %v324, %v474
  %v476 = vpop.f32.mrb[0].mxu0
  %477 = vmatprep.mubr.bf16.mxu0 0
  %478 = vmatmul.mubr.bf16.gmra.mrb[0].mxu0 %v316
  %v479 = vpop.f32.mrb[0].mxu0
  %v480 = vadd.f32 %v324, %v479
  %v481 = vpop.f32.mrb[0].mxu0
  %v482 = vpop.f32.mrb[0].mxu0
  %v483 = vadd.f32 %v324, %v482
  %v484 = vpop.f32.mrb[0].mxu0
  %485 = vmatprep.mubr.bf16.mxu0 0
  %486 = vmatmul.mubr.bf16.gmra.mrb[0].mxu0 %v317
  %v487 = vpop.f32.mrb[0].mxu0
  %v488 = vadd.f32 %v324, %v487
  %v489 = vpop.f32.mrb[0].mxu0
  %v490 = vpop.f32.mrb[0].mxu0
  %v491 = vadd.f32 %v324, %v490
  %v492 = vpop.f32.mrb[0].mxu0
  %493 = vmatprep.mubr.bf16.mxu0 0
  %494 = vmatmul.mubr.bf16.gmra.mrb[0].mxu0 %v318
  %v495 = vpop.f32.mrb[0].mxu0
  %v496 = vadd.f32 %v324, %v495
  %v497 = vpop.f32.mrb[0].mxu0
  %v498 = vpop.f32.mrb[0].mxu0
  %v499 = vadd.f32 %v324, %v498
  %v500 = vpop.f32.mrb[0].mxu0
  %501 = vmatprep.mubr.bf16.mxu0 0
  %502 = vmatmul.mubr.bf16.gmra.mrb[0].mxu0 %v319
  %v503 = vpop.f32.mrb[0].mxu0
  %v504 = vadd.f32 %v324, %v503
  %v505 = vpop.f32.mrb[0].mxu0
  %v506 = vpop.f32.mrb[0].mxu0
  %v507 = vpop.f32.mrb[0].mxu0
  %508 = vdwg.mxu0
  %v509 = vmax.f32 %v408, 0.0
  %v510 = vmax.f32 %v411, 0.0
  %v511 = vmax.f32 %v416, 0.0
  %v512 = vmax.f32 %v419, 0.0
  %v513 = vmax.f32 %v424, 0.0
  %v514 = vmax.f32 %v427, 0.0
  %v515 = vmax.f32 %v432, 0.0
  %v516 = vmax.f32 %v435, 0.0
  %v517 = vmax.f32 %v440, 0.0
  %v518 = vmax.f32 %v443, 0.0
  %v519 = vmax.f32 %v448, 0.0
  %v520 = vmax.f32 %v451, 0.0
  %v521 = vmax.f32 %v456, 0.0
  %v522 = vmax.f32 %v459, 0.0
  %v523 = vmax.f32 %v464, 0.0
  %v524 = vmax.f32 %v467, 0.0
  %v525 = vmax.f32 %v472, 0.0
  %v526 = vmax.f32 %v475, 0.0
  %v527 = vmax.f32 %v480, 0.0
  %v528 = vmax.f32 %v483, 0.0
  %v529 = vmax.f32 %v488, 0.0
  %v530 = vmax.f32 %v491, 0.0
  %v531 = vmax.f32 %v496, 0.0
  %v532 = vmax.f32 %v499, 0.0
  %v533 = vmax.f32 %v504, 0.0
  %v534 = vpack.c.bf16 %v510, %v509
  %v535 = vpack.c.bf16 %v512, %v511
  %v536 = vpack.c.bf16 %v514, %v513
  %v537 = vpack.c.bf16 %v516, %v515
  %v538 = vpack.c.bf16 %v518, %v517
  %v539 = vpack.c.bf16 %v520, %v519
  %v540 = vpack.c.bf16 %v522, %v521
  %v541 = vpack.c.bf16 %v524, %v523
  %v542 = vpack.c.bf16 %v526, %v525
  %v543 = vpack.c.bf16 %v528, %v527
  %v544 = vpack.c.bf16 %v530, %v529
  %v545 = vpack.c.bf16 %v532, %v531
  %v546 = vpack.c.bf16 %v533, %v533
  %v547 = vunpack.c.l.bf16 %v88
  %v548 = vlaneseq
  %v549 = vshrl.u32 %v548, 7
  %v550 = vsub.s32 0, %v549
  %v551 = vrot.slane %v547, %v550
  %v568 = vunpack.c.l.b16 %v72
  %v569 = vunpack.c.l.b16 %v73
  %v570 = vunpack.c.l.b16 %v74
  %v571 = vunpack.c.l.b16 %v75
  %v572 = vunpack.c.l.b16 %v76
  %v573 = vunpack.c.l.b16 %v77
  %v574 = vunpack.c.l.b16 %v78
  %v575 = vunpack.c.l.b16 %v79
  %v576 = vunpack.c.l.b16 %v80
  %v577 = vunpack.c.l.b16 %v81
  %v578 = vunpack.c.l.b16 %v82
  %v579 = vunpack.c.l.b16 %v83
  %v580 = vunpack.c.l.b16 %v84
  %v581 = vunpack.c.l.b16 %v85
  %v582 = vunpack.c.l.b16 %v86
  %v583 = vunpack.c.l.b16 %v87
  %v584 = vpack.c.b16 %v569, %v568
  %v585 = vpack.c.b16 %v571, %v570
  %v586 = vpack.c.b16 %v573, %v572
  %v587 = vpack.c.b16 %v575, %v574
  %v588 = vpack.c.b16 %v577, %v576
  %v589 = vpack.c.b16 %v579, %v578
  %v590 = vpack.c.b16 %v581, %v580
  %v591 = vpack.c.b16 %v583, %v582
  %600 = vmatprep.subr.bf16.mxu0 0
  %601 = vmatpush1.bf16.msra.mxu0 %v584
  %602 = vmatprep.subr.bf16.mxu0 0
  %603 = vmatpush1.bf16.msra.mxu0 %v585
  %604 = vmatprep.subr.bf16.mxu0 0
  %605 = vmatpush1.bf16.msra.mxu0 %v586
  %606 = vmatprep.subr.bf16.mxu0 0
  %607 = vmatpush1.bf16.msra.mxu0 %v587
  %608 = vmatprep.subr.bf16.mxu0 0
  %609 = vmatpush1.bf16.msra.mxu0 %v588
  %610 = vmatprep.subr.bf16.mxu0 0
  %611 = vmatpush1.bf16.msra.mxu0 %v589
  %612 = vmatprep.subr.bf16.mxu0 0
  %613 = vmatpush1.bf16.msra.mxu0 %v590
  %614 = vmatprep.subr.bf16.mxu0 0
  %615 = vmatpush1.bf16.msra.mxu0 %v591
  %616 = vmatprep.subr.bf16.mxu0 0
  %617 = vmatpush1.bf16.msra.mxu0 0
  %618 = vmatprep.subr.bf16.mxu0 0
  %619 = vmatpush1.bf16.msra.mxu0 0
  %620 = vmatprep.subr.bf16.mxu0 0
  %621 = vmatpush1.bf16.msra.mxu0 0
  %622 = vmatprep.subr.bf16.mxu0 0
  %623 = vmatpush1.bf16.msra.mxu0 0
  %624 = vmatprep.subr.bf16.mxu0 0
  %625 = vmatpush1.bf16.msra.mxu0 0
  %626 = vmatprep.subr.bf16.mxu0 0
  %627 = vmatpush1.bf16.msra.mxu0 0
  %628 = vmatprep.subr.bf16.mxu0 0
  %629 = vmatpush1.bf16.msra.mxu0 0
  %630 = vmatprep.subr.bf16.mxu0 0
  %631 = vmatpush1.bf16.msra.mxu0 0
  %632 = vmatprep.mubr.bf16.mxu0 0
  %633 = vmatmul.mubr.bf16.gmra.mrb[0].mxu0 %v534
  %v634 = vpop.f32.mrb[0].mxu0
  %v635 = vadd.f32 %v551, %v634
  %v636 = vpop.f32.mrb[0].mxu0
  %v637 = vpop.f32.mrb[0].mxu0
  %v638 = vadd.f32 %v551, %v637
  %v639 = vpop.f32.mrb[0].mxu0
  %640 = vmatprep.mubr.bf16.mxu0 0
  %641 = vmatmul.mubr.bf16.gmra.mrb[0].mxu0 %v535
  %v642 = vpop.f32.mrb[0].mxu0
  %v643 = vadd.f32 %v551, %v642
  %v644 = vpop.f32.mrb[0].mxu0
  %v645 = vpop.f32.mrb[0].mxu0
  %v646 = vadd.f32 %v551, %v645
  %v647 = vpop.f32.mrb[0].mxu0
  %648 = vmatprep.mubr.bf16.mxu0 0
  %649 = vmatmul.mubr.bf16.gmra.mrb[0].mxu0 %v536
  %v650 = vpop.f32.mrb[0].mxu0
  %v651 = vadd.f32 %v551, %v650
  %v652 = vpop.f32.mrb[0].mxu0
  %v653 = vpop.f32.mrb[0].mxu0
  %v654 = vadd.f32 %v551, %v653
  %v655 = vpop.f32.mrb[0].mxu0
  %656 = vmatprep.mubr.bf16.mxu0 0
  %657 = vmatmul.mubr.bf16.gmra.mrb[0].mxu0 %v537
  %v658 = vpop.f32.mrb[0].mxu0
  %v659 = vadd.f32 %v551, %v658
  %v660 = vpop.f32.mrb[0].mxu0
  %v661 = vpop.f32.mrb[0].mxu0
  %v662 = vadd.f32 %v551, %v661
  %v663 = vpop.f32.mrb[0].mxu0
  %664 = vmatprep.mubr.bf16.mxu0 0
  %665 = vmatmul.mubr.bf16.gmra.mrb[0].mxu0 %v538
  %v666 = vpop.f32.mrb[0].mxu0
  %v667 = vadd.f32 %v551, %v666
  %v668 = vpop.f32.mrb[0].mxu0
  %v669 = vpop.f32.mrb[0].mxu0
  %v670 = vadd.f32 %v551, %v669
  %v671 = vpop.f32.mrb[0].mxu0
  %672 = vmatprep.mubr.bf16.mxu0 0
  %673 = vmatmul.mubr.bf16.gmra.mrb[0].mxu0 %v539
  %v674 = vpop.f32.mrb[0].mxu0
  %v675 = vadd.f32 %v551, %v674
  %v676 = vpop.f32.mrb[0].mxu0
  %v677 = vpop.f32.mrb[0].mxu0
  %v678 = vadd.f32 %v551, %v677
  %v679 = vpop.f32.mrb[0].mxu0
  %680 = vmatprep.mubr.bf16.mxu0 0
  %681 = vmatmul.mubr.bf16.gmra.mrb[0].mxu0 %v540
  %v682 = vpop.f32.mrb[0].mxu0
  %v683 = vadd.f32 %v551, %v682
  %v684 = vpop.f32.mrb[0].mxu0
  %v685 = vpop.f32.mrb[0].mxu0
  %v686 = vadd.f32 %v551, %v685
  %v687 = vpop.f32.mrb[0].mxu0
  %688 = vmatprep.mubr.bf16.mxu0 0
  %689 = vmatmul.mubr.bf16.gmra.mrb[0].mxu0 %v541
  %v690 = vpop.f32.mrb[0].mxu0
  %v691 = vadd.f32 %v551, %v690
  %v692 = vpop.f32.mrb[0].mxu0
  %v693 = vpop.f32.mrb[0].mxu0
  %v694 = vadd.f32 %v551, %v693
  %v695 = vpop.f32.mrb[0].mxu0
  %696 = vmatprep.mubr.bf16.mxu0 0
  %697 = vmatmul.mubr.bf16.gmra.mrb[0].mxu0 %v542
  %v698 = vpop.f32.mrb[0].mxu0
  %v699 = vadd.f32 %v551, %v698
  %v700 = vpop.f32.mrb[0].mxu0
  %v701 = vpop.f32.mrb[0].mxu0
  %v702 = vadd.f32 %v551, %v701
  %v703 = vpop.f32.mrb[0].mxu0
  %704 = vmatprep.mubr.bf16.mxu0 0
  %705 = vmatmul.mubr.bf16.gmra.mrb[0].mxu0 %v543
  %v706 = vpop.f32.mrb[0].mxu0
  %v707 = vadd.f32 %v551, %v706
  %v708 = vpop.f32.mrb[0].mxu0
  %v709 = vpop.f32.mrb[0].mxu0
  %v710 = vadd.f32 %v551, %v709
  %v711 = vpop.f32.mrb[0].mxu0
  %712 = vmatprep.mubr.bf16.mxu0 0
  %713 = vmatmul.mubr.bf16.gmra.mrb[0].mxu0 %v544
  %v714 = vpop.f32.mrb[0].mxu0
  %v715 = vadd.f32 %v551, %v714
  %v716 = vpop.f32.mrb[0].mxu0
  %v717 = vpop.f32.mrb[0].mxu0
  %v718 = vadd.f32 %v551, %v717
  %v719 = vpop.f32.mrb[0].mxu0
  %720 = vmatprep.mubr.bf16.mxu0 0
  %721 = vmatmul.mubr.bf16.gmra.mrb[0].mxu0 %v545
  %v722 = vpop.f32.mrb[0].mxu0
  %v723 = vadd.f32 %v551, %v722
  %v724 = vpop.f32.mrb[0].mxu0
  %v725 = vpop.f32.mrb[0].mxu0
  %v726 = vadd.f32 %v551, %v725
  %v727 = vpop.f32.mrb[0].mxu0
  %728 = vmatprep.mubr.bf16.mxu0 0
  %729 = vmatmul.mubr.bf16.gmra.mrb[0].mxu0 %v546
  %v730 = vpop.f32.mrb[0].mxu0
  %v731 = vadd.f32 %v551, %v730
  %v732 = vpop.f32.mrb[0].mxu0
  %v733 = vpop.f32.mrb[0].mxu0
  %v734 = vpop.f32.mrb[0].mxu0
  %735 = vdwg.mxu0
  %v736 = vmax.f32 %v635, 0.0
  %v737 = vmax.f32 %v638, 0.0
  %v738 = vmax.f32 %v643, 0.0
  %v739 = vmax.f32 %v646, 0.0
  %v740 = vmax.f32 %v651, 0.0
  %v741 = vmax.f32 %v654, 0.0
  %v742 = vmax.f32 %v659, 0.0
  %v743 = vmax.f32 %v662, 0.0
  %v744 = vmax.f32 %v667, 0.0
  %v745 = vmax.f32 %v670, 0.0
  %v746 = vmax.f32 %v675, 0.0
  %v747 = vmax.f32 %v678, 0.0
  %v748 = vmax.f32 %v683, 0.0
  %v749 = vmax.f32 %v686, 0.0
  %v750 = vmax.f32 %v691, 0.0
  %v751 = vmax.f32 %v694, 0.0
  %v752 = vmax.f32 %v699, 0.0
  %v753 = vmax.f32 %v702, 0.0
  %v754 = vmax.f32 %v707, 0.0
  %v755 = vmax.f32 %v710, 0.0
  %v756 = vmax.f32 %v715, 0.0
  %v757 = vmax.f32 %v718, 0.0
  %v758 = vmax.f32 %v723, 0.0
  %v759 = vmax.f32 %v726, 0.0
  %v760 = vmax.f32 %v731, 0.0
  %v761 = vand.u32 2147483647, %v635
  %v762 = vand.u32 2147483647, %v638
  %v763 = vand.u32 2147483647, %v643
  %v764 = vand.u32 2147483647, %v646
  %v765 = vand.u32 2147483647, %v651
  %v766 = vand.u32 2147483647, %v654
  %v767 = vand.u32 2147483647, %v659
  %v768 = vand.u32 2147483647, %v662
  %v769 = vand.u32 2147483647, %v667
  %v770 = vand.u32 2147483647, %v670
  %v771 = vand.u32 2147483647, %v675
  %v772 = vand.u32 2147483647, %v678
  %v773 = vand.u32 2147483647, %v683
  %v774 = vand.u32 2147483647, %v686
  %v775 = vand.u32 2147483647, %v691
  %v776 = vand.u32 2147483647, %v694
  %v777 = vand.u32 2147483647, %v699
  %v778 = vand.u32 2147483647, %v702
  %v779 = vand.u32 2147483647, %v707
  %v780 = vand.u32 2147483647, %v710
  %v781 = vand.u32 2147483647, %v715
  %v782 = vand.u32 2147483647, %v718
  %v783 = vand.u32 2147483647, %v723
  %v784 = vand.u32 2147483647, %v726
  %v785 = vand.u32 2147483647, %v731
  %v786 = vsub.f32 0.0, %v761
  %v787 = vsub.f32 0.0, %v762
  %v788 = vsub.f32 0.0, %v763
  %v789 = vsub.f32 0.0, %v764
  %v790 = vsub.f32 0.0, %v765
  %v791 = vsub.f32 0.0, %v766
  %v792 = vsub.f32 0.0, %v767
  %v793 = vsub.f32 0.0, %v768
  %v794 = vsub.f32 0.0, %v769
  %v795 = vsub.f32 0.0, %v770
  %v796 = vsub.f32 0.0, %v771
  %v797 = vsub.f32 0.0, %v772
  %v798 = vsub.f32 0.0, %v773
  %v799 = vsub.f32 0.0, %v774
  %v800 = vsub.f32 0.0, %v775
  %v801 = vsub.f32 0.0, %v776
  %v802 = vsub.f32 0.0, %v777
  %v803 = vsub.f32 0.0, %v778
  %v804 = vsub.f32 0.0, %v779
  %v805 = vsub.f32 0.0, %v780
  %v806 = vsub.f32 0.0, %v781
  %v807 = vsub.f32 0.0, %v782
  %v808 = vsub.f32 0.0, %v783
  %v809 = vsub.f32 0.0, %v784
  %v810 = vsub.f32 0.0, %v785
  %v811 = vmul.f32 %v786, 1.442695
  %v812 = vpow.pop %v811
  %v813 = vmul.f32 %v787, 1.442695
  %v814 = vpow.pop %v813
  %v815 = vmul.f32 %v788, 1.442695
  %v816 = vpow.pop %v815
  %v817 = vmul.f32 %v789, 1.442695
  %v818 = vpow.pop %v817
  %v819 = vmul.f32 %v790, 1.442695
  %v820 = vpow.pop %v819
  %v821 = vmul.f32 %v791, 1.442695
  %v822 = vpow.pop %v821
  %v823 = vmul.f32 %v792, 1.442695
  %v824 = vpow.pop %v823
  %v825 = vmul.f32 %v793, 1.442695
  %v826 = vpow.pop %v825
  %v827 = vmul.f32 %v794, 1.442695
  %v828 = vpow.pop %v827
  %v829 = vmul.f32 %v795, 1.442695
  %v830 = vpow.pop %v829
  %v831 = vmul.f32 %v796, 1.442695
  %v832 = vpow.pop %v831
  %v833 = vmul.f32 %v797, 1.442695
  %v834 = vpow.pop %v833
  %v835 = vmul.f32 %v798, 1.442695
  %v836 = vpow.pop %v835
  %v837 = vmul.f32 %v799, 1.442695
  %v838 = vpow.pop %v837
  %v839 = vmul.f32 %v800, 1.442695
  %v840 = vpow.pop %v839
  %v841 = vmul.f32 %v801, 1.442695
  %v842 = vpow.pop %v841
  %v843 = vmul.f32 %v802, 1.442695
  %v844 = vpow.pop %v843
  %v845 = vmul.f32 %v803, 1.442695
  %v846 = vpow.pop %v845
  %v847 = vmul.f32 %v804, 1.442695
  %v848 = vpow.pop %v847
  %v849 = vmul.f32 %v805, 1.442695
  %v850 = vpow.pop %v849
  %v851 = vmul.f32 %v806, 1.442695
  %v852 = vpow.pop %v851
  %v853 = vmul.f32 %v807, 1.442695
  %v854 = vpow.pop %v853
  %v855 = vmul.f32 %v808, 1.442695
  %v856 = vpow.pop %v855
  %v857 = vmul.f32 %v809, 1.442695
  %v858 = vpow.pop %v857
  %v859 = vmul.f32 %v810, 1.442695
  %v860 = vpow.pop %v859
  %v861 = vadd.f32 %v812, 1.0
  %v862 = vlog2.pop %v861
  %v863 = vmul.f32 %v862, 0.6931472
  %v864 = vmul.f32 -0.5, %v812
  %v865 = vadd.f32 %v864, 1.0
  %v866 = vmul.f32 %v865, %v812
  %v867 = vand.u32 2147483647, %v812
  %vm868 = vcmp.lt.f32.partialorder %v867, 0.0004427343
  %v869 = vsel %vm868, %v866, %v863
  %v870 = vadd.f32 %v814, 1.0
  %v871 = vlog2.pop %v870
  %v872 = vmul.f32 %v871, 0.6931472
  %v873 = vmul.f32 -0.5, %v814
  %v874 = vadd.f32 %v873, 1.0
  %v875 = vmul.f32 %v874, %v814
  %v876 = vand.u32 2147483647, %v814
  %vm877 = vcmp.lt.f32.partialorder %v876, 0.0004427343
  %v878 = vsel %vm877, %v875, %v872
  %v879 = vadd.f32 %v816, 1.0
  %v880 = vlog2.pop %v879
  %v881 = vmul.f32 %v880, 0.6931472
  %v882 = vmul.f32 -0.5, %v816
  %v883 = vadd.f32 %v882, 1.0
  %v884 = vmul.f32 %v883, %v816
  %v885 = vand.u32 2147483647, %v816
  %vm886 = vcmp.lt.f32.partialorder %v885, 0.0004427343
  %v887 = vsel %vm886, %v884, %v881
  %v888 = vadd.f32 %v818, 1.0
  %v889 = vlog2.pop %v888
  %v890 = vmul.f32 %v889, 0.6931472
  %v891 = vmul.f32 -0.5, %v818
  %v892 = vadd.f32 %v891, 1.0
  %v893 = vmul.f32 %v892, %v818
  %v894 = vand.u32 2147483647, %v818
  %vm895 = vcmp.lt.f32.partialorder %v894, 0.0004427343
  %v896 = vsel %vm895, %v893, %v890
  %v897 = vadd.f32 %v820, 1.0
  %v898 = vlog2.pop %v897
  %v899 = vmul.f32 %v898, 0.6931472
  %v900 = vmul.f32 -0.5, %v820
  %v901 = vadd.f32 %v900, 1.0
  %v902 = vmul.f32 %v901, %v820
  %v903 = vand.u32 2147483647, %v820
  %vm904 = vcmp.lt.f32.partialorder %v903, 0.0004427343
  %v905 = vsel %vm904, %v902, %v899
  %v906 = vadd.f32 %v822, 1.0
  %v907 = vlog2.pop %v906
  %v908 = vmul.f32 %v907, 0.6931472
  %v909 = vmul.f32 -0.5, %v822
  %v910 = vadd.f32 %v909, 1.0
  %v911 = vmul.f32 %v910, %v822
  %v912 = vand.u32 2147483647, %v822
  %vm913 = vcmp.lt.f32.partialorder %v912, 0.0004427343
  %v914 = vsel %vm913, %v911, %v908
  %v915 = vadd.f32 %v824, 1.0
  %v916 = vlog2.pop %v915
  %v917 = vmul.f32 %v916, 0.6931472
  %v918 = vmul.f32 -0.5, %v824
  %v919 = vadd.f32 %v918, 1.0
  %v920 = vmul.f32 %v919, %v824
  %v921 = vand.u32 2147483647, %v824
  %vm922 = vcmp.lt.f32.partialorder %v921, 0.0004427343
  %v923 = vsel %vm922, %v920, %v917
  %v924 = vadd.f32 %v826, 1.0
  %v925 = vlog2.pop %v924
  %v926 = vmul.f32 %v925, 0.6931472
  %v927 = vmul.f32 -0.5, %v826
  %v928 = vadd.f32 %v927, 1.0
  %v929 = vmul.f32 %v928, %v826
  %v930 = vand.u32 2147483647, %v826
  %vm931 = vcmp.lt.f32.partialorder %v930, 0.0004427343
  %v932 = vsel %vm931, %v929, %v926
  %v933 = vadd.f32 %v828, 1.0
  %v934 = vlog2.pop %v933
  %v935 = vmul.f32 %v934, 0.6931472
  %v936 = vmul.f32 -0.5, %v828
  %v937 = vadd.f32 %v936, 1.0
  %v938 = vmul.f32 %v937, %v828
  %v939 = vand.u32 2147483647, %v828
  %vm940 = vcmp.lt.f32.partialorder %v939, 0.0004427343
  %v941 = vsel %vm940, %v938, %v935
  %v942 = vadd.f32 %v830, 1.0
  %v943 = vlog2.pop %v942
  %v944 = vmul.f32 %v943, 0.6931472
  %v945 = vmul.f32 -0.5, %v830
  %v946 = vadd.f32 %v945, 1.0
  %v947 = vmul.f32 %v946, %v830
  %v948 = vand.u32 2147483647, %v830
  %vm949 = vcmp.lt.f32.partialorder %v948, 0.0004427343
  %v950 = vsel %vm949, %v947, %v944
  %v951 = vadd.f32 %v832, 1.0
  %v952 = vlog2.pop %v951
  %v953 = vmul.f32 %v952, 0.6931472
  %v954 = vmul.f32 -0.5, %v832
  %v955 = vadd.f32 %v954, 1.0
  %v956 = vmul.f32 %v955, %v832
  %v957 = vand.u32 2147483647, %v832
  %vm958 = vcmp.lt.f32.partialorder %v957, 0.0004427343
  %v959 = vsel %vm958, %v956, %v953
  %v960 = vadd.f32 %v834, 1.0
  %v961 = vlog2.pop %v960
  %v962 = vmul.f32 %v961, 0.6931472
  %v963 = vmul.f32 -0.5, %v834
  %v964 = vadd.f32 %v963, 1.0
  %v965 = vmul.f32 %v964, %v834
  %v966 = vand.u32 2147483647, %v834
  %vm967 = vcmp.lt.f32.partialorder %v966, 0.0004427343
  %v968 = vsel %vm967, %v965, %v962
  %v969 = vadd.f32 %v836, 1.0
  %v970 = vlog2.pop %v969
  %v971 = vmul.f32 %v970, 0.6931472
  %v972 = vmul.f32 -0.5, %v836
  %v973 = vadd.f32 %v972, 1.0
  %v974 = vmul.f32 %v973, %v836
  %v975 = vand.u32 2147483647, %v836
  %vm976 = vcmp.lt.f32.partialorder %v975, 0.0004427343
  %v977 = vsel %vm976, %v974, %v971
  %v978 = vadd.f32 %v838, 1.0
  %v979 = vlog2.pop %v978
  %v980 = vmul.f32 %v979, 0.6931472
  %v981 = vmul.f32 -0.5, %v838
  %v982 = vadd.f32 %v981, 1.0
  %v983 = vmul.f32 %v982, %v838
  %v984 = vand.u32 2147483647, %v838
  %vm985 = vcmp.lt.f32.partialorder %v984, 0.0004427343
  %v986 = vsel %vm985, %v983, %v980
  %v987 = vadd.f32 %v840, 1.0
  %v988 = vlog2.pop %v987
  %v989 = vmul.f32 %v988, 0.6931472
  %v990 = vmul.f32 -0.5, %v840
  %v991 = vadd.f32 %v990, 1.0
  %v992 = vmul.f32 %v991, %v840
  %v993 = vand.u32 2147483647, %v840
  %vm994 = vcmp.lt.f32.partialorder %v993, 0.0004427343
  %v995 = vsel %vm994, %v992, %v989
  %v996 = vadd.f32 %v842, 1.0
  %v997 = vlog2.pop %v996
  %v998 = vmul.f32 %v997, 0.6931472
  %v999 = vmul.f32 -0.5, %v842
  %v1000 = vadd.f32 %v999, 1.0
  %v1001 = vmul.f32 %v1000, %v842
  %v1002 = vand.u32 2147483647, %v842
  %vm1003 = vcmp.lt.f32.partialorder %v1002, 0.0004427343
  %v1004 = vsel %vm1003, %v1001, %v998
  %v1005 = vadd.f32 %v844, 1.0
  %v1006 = vlog2.pop %v1005
  %v1007 = vmul.f32 %v1006, 0.6931472
  %v1008 = vmul.f32 -0.5, %v844
  %v1009 = vadd.f32 %v1008, 1.0
  %v1010 = vmul.f32 %v1009, %v844
  %v1011 = vand.u32 2147483647, %v844
  %vm1012 = vcmp.lt.f32.partialorder %v1011, 0.0004427343
  %v1013 = vsel %vm1012, %v1010, %v1007
  %v1014 = vadd.f32 %v846, 1.0
  %v1015 = vlog2.pop %v1014
  %v1016 = vmul.f32 %v1015, 0.6931472
  %v1017 = vmul.f32 -0.5, %v846
  %v1018 = vadd.f32 %v1017, 1.0
  %v1019 = vmul.f32 %v1018, %v846
  %v1020 = vand.u32 2147483647, %v846
  %vm1021 = vcmp.lt.f32.partialorder %v1020, 0.0004427343
  %v1022 = vsel %vm1021, %v1019, %v1016
  %v1023 = vadd.f32 %v848, 1.0
  %v1024 = vlog2.pop %v1023
  %v1025 = vmul.f32 %v1024, 0.6931472
  %v1026 = vmul.f32 -0.5, %v848
  %v1027 = vadd.f32 %v1026, 1.0
  %v1028 = vmul.f32 %v1027, %v848
  %v1029 = vand.u32 2147483647, %v848
  %vm1030 = vcmp.lt.f32.partialorder %v1029, 0.0004427343
  %v1031 = vsel %vm1030, %v1028, %v1025
  %v1032 = vadd.f32 %v850, 1.0
  %v1033 = vlog2.pop %v1032
  %v1034 = vmul.f32 %v1033, 0.6931472
  %v1035 = vmul.f32 -0.5, %v850
  %v1036 = vadd.f32 %v1035, 1.0
  %v1037 = vmul.f32 %v1036, %v850
  %v1038 = vand.u32 2147483647, %v850
  %vm1039 = vcmp.lt.f32.partialorder %v1038, 0.0004427343
  %v1040 = vsel %vm1039, %v1037, %v1034
  %v1041 = vadd.f32 %v852, 1.0
  %v1042 = vlog2.pop %v1041
  %v1043 = vmul.f32 %v1042, 0.6931472
  %v1044 = vmul.f32 -0.5, %v852
  %v1045 = vadd.f32 %v1044, 1.0
  %v1046 = vmul.f32 %v1045, %v852
  %v1047 = vand.u32 2147483647, %v852
  %vm1048 = vcmp.lt.f32.partialorder %v1047, 0.0004427343
  %v1049 = vsel %vm1048, %v1046, %v1043
  %v1050 = vadd.f32 %v854, 1.0
  %v1051 = vlog2.pop %v1050
  %v1052 = vmul.f32 %v1051, 0.6931472
  %v1053 = vmul.f32 -0.5, %v854
  %v1054 = vadd.f32 %v1053, 1.0
  %v1055 = vmul.f32 %v1054, %v854
  %v1056 = vand.u32 2147483647, %v854
  %vm1057 = vcmp.lt.f32.partialorder %v1056, 0.0004427343
  %v1058 = vsel %vm1057, %v1055, %v1052
  %v1059 = vadd.f32 %v856, 1.0
  %v1060 = vlog2.pop %v1059
  %v1061 = vmul.f32 %v1060, 0.6931472
  %v1062 = vmul.f32 -0.5, %v856
  %v1063 = vadd.f32 %v1062, 1.0
  %v1064 = vmul.f32 %v1063, %v856
  %v1065 = vand.u32 2147483647, %v856
  %vm1066 = vcmp.lt.f32.partialorder %v1065, 0.0004427343
  %v1067 = vsel %vm1066, %v1064, %v1061
  %v1068 = vadd.f32 %v858, 1.0
  %v1069 = vlog2.pop %v1068
  %v1070 = vmul.f32 %v1069, 0.6931472
  %v1071 = vmul.f32 -0.5, %v858
  %v1072 = vadd.f32 %v1071, 1.0
  %v1073 = vmul.f32 %v1072, %v858
  %v1074 = vand.u32 2147483647, %v858
  %vm1075 = vcmp.lt.f32.partialorder %v1074, 0.0004427343
  %v1076 = vsel %vm1075, %v1073, %v1070
  %v1077 = vadd.f32 %v860, 1.0
  %v1078 = vlog2.pop %v1077
  %v1079 = vmul.f32 %v1078, 0.6931472
  %v1080 = vmul.f32 -0.5, %v860
  %v1081 = vadd.f32 %v1080, 1.0
  %v1082 = vmul.f32 %v1081, %v860
  %v1083 = vand.u32 2147483647, %v860
  %vm1084 = vcmp.lt.f32.partialorder %v1083, 0.0004427343
  %v1085 = vsel %vm1084, %v1082, %v1079
  %v1086 = vadd.f32 %v736, %v869
  %v1087 = vadd.f32 %v737, %v878
  %v1088 = vadd.f32 %v738, %v887
  %v1089 = vadd.f32 %v739, %v896
  %v1090 = vadd.f32 %v740, %v905
  %v1091 = vadd.f32 %v741, %v914
  %v1092 = vadd.f32 %v742, %v923
  %v1093 = vadd.f32 %v743, %v932
  %v1094 = vadd.f32 %v744, %v941
  %v1095 = vadd.f32 %v745, %v950
  %v1096 = vadd.f32 %v746, %v959
  %v1097 = vadd.f32 %v747, %v968
  %v1098 = vadd.f32 %v748, %v977
  %v1099 = vadd.f32 %v749, %v986
  %v1100 = vadd.f32 %v750, %v995
  %v1101 = vadd.f32 %v751, %v1004
  %v1102 = vadd.f32 %v752, %v1013
  %v1103 = vadd.f32 %v753, %v1022
  %v1104 = vadd.f32 %v754, %v1031
  %v1105 = vadd.f32 %v755, %v1040
  %v1106 = vadd.f32 %v756, %v1049
  %v1107 = vadd.f32 %v757, %v1058
  %v1108 = vadd.f32 %v758, %v1067
  %v1109 = vadd.f32 %v759, %v1076
  %v1110 = vadd.f32 %v760, %v1085
  %v1111 = vmax.f32 %v1086, 0.0
  %v1112 = vmax.f32 %v1087, 0.0
  %v1113 = vmax.f32 %v1088, 0.0
  %v1114 = vmax.f32 %v1089, 0.0
  %v1115 = vmax.f32 %v1090, 0.0
  %v1116 = vmax.f32 %v1091, 0.0
  %v1117 = vmax.f32 %v1092, 0.0
  %v1118 = vmax.f32 %v1093, 0.0
  %v1119 = vmax.f32 %v1094, 0.0
  %v1120 = vmax.f32 %v1095, 0.0
  %v1121 = vmax.f32 %v1096, 0.0
  %v1122 = vmax.f32 %v1097, 0.0
  %v1123 = vmax.f32 %v1098, 0.0
  %v1124 = vmax.f32 %v1099, 0.0
  %v1125 = vmax.f32 %v1100, 0.0
  %v1126 = vmax.f32 %v1101, 0.0
  %v1127 = vmax.f32 %v1102, 0.0
  %v1128 = vmax.f32 %v1103, 0.0
  %v1129 = vmax.f32 %v1104, 0.0
  %v1130 = vmax.f32 %v1105, 0.0
  %v1131 = vmax.f32 %v1106, 0.0
  %v1132 = vmax.f32 %v1107, 0.0
  %v1133 = vmax.f32 %v1108, 0.0
  %v1134 = vmax.f32 %v1109, 0.0
  %v1135 = vmax.f32 %v1110, 0.0
  %v1136 = vmin.f32 %v1111, 100.0
  %v1137 = vmin.f32 %v1112, 100.0
  %v1138 = vmin.f32 %v1113, 100.0
  %v1139 = vmin.f32 %v1114, 100.0
  %v1140 = vmin.f32 %v1115, 100.0
  %v1141 = vmin.f32 %v1116, 100.0
  %v1142 = vmin.f32 %v1117, 100.0
  %v1143 = vmin.f32 %v1118, 100.0
  %v1144 = vmin.f32 %v1119, 100.0
  %v1145 = vmin.f32 %v1120, 100.0
  %v1146 = vmin.f32 %v1121, 100.0
  %v1147 = vmin.f32 %v1122, 100.0
  %v1148 = vmin.f32 %v1123, 100.0
  %v1149 = vmin.f32 %v1124, 100.0
  %v1150 = vmin.f32 %v1125, 100.0
  %v1151 = vmin.f32 %v1126, 100.0
  %v1152 = vmin.f32 %v1127, 100.0
  %v1153 = vmin.f32 %v1128, 100.0
  %v1154 = vmin.f32 %v1129, 100.0
  %v1155 = vmin.f32 %v1130, 100.0
  %v1156 = vmin.f32 %v1131, 100.0
  %v1157 = vmin.f32 %v1132, 100.0
  %v1158 = vmin.f32 %v1133, 100.0
  %v1159 = vmin.f32 %v1134, 100.0
  %v1160 = vmin.f32 %v1135, 100.0
  %vm1161 = vcmask 31744
  %1162 = vst.msk [vmem:[%s2] sm:$0xff] %vm1161, %v1136
  %1163 = vst.msk [vmem:[%s2 + $0x8] sm:$0xff] %vm1161, %v1137
  %1164 = vst.msk [vmem:[%s2 + $0x10] sm:$0xff] %vm1161, %v1138
  %1165 = vst.msk [vmem:[%s2 + $0x18] sm:$0xff] %vm1161, %v1139
  %1166 = vst.msk [vmem:[%s2 + $0x20] sm:$0xff] %vm1161, %v1140
  %1167 = vst.msk [vmem:[%s2 + $0x28] sm:$0xff] %vm1161, %v1141
  %1168 = vst.msk [vmem:[%s2 + $0x30] sm:$0xff] %vm1161, %v1142
  %1169 = vst.msk [vmem:[%s2 + $0x38] sm:$0xff] %vm1161, %v1143
  %1170 = vst.msk [vmem:[%s2 + $0x40] sm:$0xff] %vm1161, %v1144
  %1171 = vst.msk [vmem:[%s2 + $0x48] sm:$0xff] %vm1161, %v1145
  %1172 = vst.msk [vmem:[%s2 + $0x50] sm:$0xff] %vm1161, %v1146
  %1173 = vst.msk [vmem:[%s2 + $0x58] sm:$0xff] %vm1161, %v1147
  %1174 = vst.msk [vmem:[%s2 + $0x60] sm:$0xff] %vm1161, %v1148
  %1175 = vst.msk [vmem:[%s2 + $0x68] sm:$0xff] %vm1161, %v1149
  %1176 = vst.msk [vmem:[%s2 + $0x70] sm:$0xff] %vm1161, %v1150
  %1177 = vst.msk [vmem:[%s2 + $0x78] sm:$0xff] %vm1161, %v1151
  %1178 = vst.msk [vmem:[%s2 + $0x80] sm:$0xff] %vm1161, %v1152
  %1179 = vst.msk [vmem:[%s2 + $0x88] sm:$0xff] %vm1161, %v1153
  %1180 = vst.msk [vmem:[%s2 + $0x90] sm:$0xff] %vm1161, %v1154
  %1181 = vst.msk [vmem:[%s2 + $0x98] sm:$0xff] %vm1161, %v1155
  %1182 = vst.msk [vmem:[%s2 + $0xa0] sm:$0xff] %vm1161, %v1156
  %1183 = vst.msk [vmem:[%s2 + $0xa8] sm:$0xff] %vm1161, %v1157
  %1184 = vst.msk [vmem:[%s2 + $0xb0] sm:$0xff] %vm1161, %v1158
  %1185 = vst.msk [vmem:[%s2 + $0xb8] sm:$0xff] %vm1161, %v1159
  %1186 = vst.msk [vmem:[%s2 + $0xc0] sm:$0xff] %vm1161, %v1160
  // Predicated region
  $region10: #{tpu_custom_call.1} parent=0 // pred_check
    _
  $region11: #{tpu_custom_call.1} parent=0 // pred_check_branch
    %1188 = sbr.rel (0) target = $region13
  $region12: #{tpu_custom_call.1} parent=0 // pred_region
    _
  $region13: #{tpu_custom_call.1} parent=0 // pred_fallthru
    _
  // Predicated region
  $region14: #{tpu_custom_call.1} parent=0 // pred_check
    _
  $region15: #{tpu_custom_call.1} parent=0 // pred_check_branch
    %1190 = sbr.rel (0) target = $region17
  $region16: #{tpu_custom_call.1} parent=0 // pred_region
    _
  $region17: #{tpu_custom_call.1} parent=0 // pred_fallthru
    _

</llo_original>
